<compile_context>
chip_gen: v7x
topology: tpu7x:2x2x1
jax: 0.10.0
libtpu: 0.0.40
codegen_flags: <defaults>
</compile_context>

<pallas_src>
import functools

import jax
import jax.numpy as jnp
from jax.experimental import pallas as pl
from jax.experimental.pallas import tpu as pltpu


# -----------------------------------------------------------------------------
# One-time probe: pin down the rotation direction of pltpu.roll so the
# reflection shifts below are correct regardless of backend convention.
# Must run (and cache) OUTSIDE of any jit trace first - __main__ calls it
# eagerly before the jitted forward; afterwards it is a cached bool.
# -----------------------------------------------------------------------------
@functools.lru_cache(maxsize=None)
def _roll_matches_numpy() -> bool:
    """True iff pltpu.roll(x, 1, axis)[..., i] == x[..., i - 1] (np.roll)."""

    def k(x_ref, o_ref):
        o_ref[...] = pltpu.roll(x_ref[...], 1, 1)

    x = jnp.tile(jnp.arange(128, dtype=jnp.float32)[None, :], (8, 1))
    y = pl.pallas_call(
        k, out_shape=jax.ShapeDtypeStruct((8, 128), jnp.float32))(x)
    return float(y[0, 1]) == 0.0


# -----------------------------------------------------------------------------
# Pallas kernel: one grid step = one mixer node x one group of G batch images,
# with the G images folded into the lane axis (last dim = G*H).
#
# body: reflect-pad(1) -> conv3x3 (2->2, bias) -> InstanceNorm2d(2) -> ReLU
#       -> reflect-pad(1) -> conv3x3 (2->1, bias)
# -----------------------------------------------------------------------------
def _mixer_level_kernel(x_ref, w1_ref, b1_ref, w2_ref, b2_ref, o_ref,
                        *, H, G, roll_np):
    # x_ref : (1, 1, 2, W, G*H) VMEM   channels A/B, G batch elems along lanes
    # w1_ref: (n_nodes*36,)     SMEM   flat conv1 weights [node, co, ci, ki, kj]
    # b1_ref: (n_nodes*2,)      SMEM
    # w2_ref: (n_nodes*18,)     SMEM   flat conv2 weights [node, ci, ki, kj]
    # b2_ref: (n_nodes,)        SMEM
    # o_ref : (1, 1, W, G*H)    VMEM
    n = pl.program_id(0)
    W = x_ref.shape[3]
    L = x_ref.shape[4]                      # == G * H
    f32 = jnp.float32

    if roll_np:
        def _prev(v, ax):                   # value at index-1 (cyclic)
            return pltpu.roll(v, 1, ax)

        def _next(v, ax):                   # value at index+1 (cyclic)
            return pltpu.roll(v, v.shape[ax] - 1, ax)
    else:
        def _prev(v, ax):
            return pltpu.roll(v, v.shape[ax] - 1, ax)

        def _next(v, ax):
            return pltpu.roll(v, 1, ax)

    rowi = jax.lax.broadcasted_iota(jnp.int32, (W, L), 0)
    coli = jax.lax.broadcasted_iota(jnp.int32, (W, L), 1)
    row_first = rowi == 0
    row_last = rowi == W - 1
    col_first = coli == 0                   # start of each H-wide lane segment
    col_last = coli == H - 1                # end of each H-wide lane segment
    for g in range(1, G):
        col_first = col_first | (coli == g * H)
        col_last = col_last | (coli == g * H + H - 1)

    def taps9(p):
        """9 reflection-padded 3x3 tap planes of p, (di, dj) row-major.

        The cyclic wrap of the rolls never leaks across image (lane-segment)
        boundaries: those positions are exactly the ones overwritten by the
        reflection fix-ups.
        """
        pm = _prev(p, 0)
        pp = _next(p, 0)
        rows = (jnp.where(row_first, pp, pm),        # di = -1 (reflect at i=0)
                p,                                   # di =  0
                jnp.where(row_last, pm, pp))         # di = +1 (reflect at i=W-1)
        out = []
        for r in rows:
            lm = _prev(r, 1)
            lp = _next(r, 1)
            out.append(jnp.where(col_first, lp, lm))  # dj = -1
            out.append(r)                             # dj =  0
            out.append(jnp.where(col_last, lm, lp))   # dj = +1
        return out

    xin = [x_ref[0, 0, c].astype(f32) for c in range(2)]

    # --- conv3x3, 2 -> 2 (+bias). Tap planes built once per input channel and
    #     reused for both output channels.
    acc = [jnp.zeros((W, L), f32), jnp.zeros((W, L), f32)]
    for ci in range(2):
        t = taps9(xin[ci])
        for co in range(2):
            base = n * 36 + co * 18 + ci * 9
            for k in range(9):
                acc[co] = acc[co] + w1_ref[base + k] * t[k]

    # --- InstanceNorm2d(2) (biased var, eps=1e-5, no affine) + ReLU.
    #     Stats are per (batch, channel), i.e. per H-wide lane segment.
    inv_cnt = 1.0 / float(W * H)
    ccol = jax.lax.broadcasted_iota(jnp.int32, (1, L), 1)
    seg_masks = [(ccol >= g * H) & (ccol < (g + 1) * H) for g in range(G)]
    y = []
    for co in range(2):
        a = acc[co] + b1_ref[n * 2 + co]
        colsum = jnp.sum(a, axis=0, keepdims=True)                  # (1, L)
        mean_c = jnp.zeros((1, L), f32)
        for m in seg_masks:
            s = jnp.sum(jnp.where(m, colsum, 0.0), axis=1, keepdims=True)
            mean_c = jnp.where(m, s * inv_cnt, mean_c)
        d = a - mean_c
        colsq = jnp.sum(d * d, axis=0, keepdims=True)               # (1, L)
        rstd_c = jnp.zeros((1, L), f32)
        for m in seg_masks:
            v = jnp.sum(jnp.where(m, colsq, 0.0), axis=1, keepdims=True)
            rstd_c = jnp.where(m, jax.lax.rsqrt(v * inv_cnt + 1e-5), rstd_c)
        y.append(jnp.maximum(d * rstd_c, 0.0))

    # --- conv3x3, 2 -> 1 (+bias)
    out = jnp.zeros((W, L), f32) + b2_ref[n]
    for ci in range(2):
        t = taps9(y[ci])
        base = n * 18 + ci * 9
        for k in range(9):
            out = out + w2_ref[base + k] * t[k]

    o_ref[...] = out[None, None].astype(o_ref.dtype)


# -----------------------------------------------------------------------------
# Wrapper: one pallas_call per tree level.
# -----------------------------------------------------------------------------
def _lane_fold(bs, H):
    """Number of batch elements folded into the lane axis (lane width G*H).

    Smallest divisor of bs that reaches >=128 lanes (falls back to bs) so
    loads/stores are lane-dense while keeping the remaining batch as a
    parallel grid axis for megacore sharding.
    """
    best = 1
    for g in range(1, bs + 1):
        if bs % g == 0:
            best = g
            if g * H >= 128:
                break
    return best


def mixer_level_pallas(xA, xB, w1, b1, w2, b2):
    """Run every mixer node of one tree level in a single pallas_call.

    xA, xB : (n_nodes, bs, W, H)   per-node input planes (channels A and B)
    w1     : (n_nodes, 2, 2, 3, 3)   b1: (n_nodes, 2)
    w2     : (n_nodes, 1, 2, 3, 3)   b2: (n_nodes, 1)
    returns: (n_nodes, bs, W, H)
    """
    n_nodes, bs, W, H = xA.shape
    assert W >= 2 and H >= 2, "ReflectionPad2d(1) requires spatial dims >= 2"
    G = _lane_fold(bs, H)
    bs_g = bs // G
    L = G * H
    dtype = xA.dtype

    # Layout plumbing (outside the kernel): fold G batch elements into the
    # lane axis -> kernel sees lane-dense (W, G*H) slabs.
    x = jnp.stack([xA, xB], axis=2)                     # (n, bs, 2, W, H)
    x = x.reshape(n_nodes, bs_g, G, 2, W, H)
    x = x.transpose(0, 1, 3, 4, 2, 5)                   # (n, bs_g, 2, W, G, H)
    x = x.reshape(n_nodes, bs_g, 2, W, L)

    roll_np = _roll_matches_numpy()     # cached bool (probed eagerly in main)

    block_bytes = 3 * W * L * jnp.dtype(dtype).itemsize
    vmem_limit = int(min(64 * 1024 * 1024,
                         max(32 * 1024 * 1024, 32 * block_bytes)))
    # TODO(synk): for very large W*H planes, tile spatially with a halo
    # index_map instead of whole-plane blocks (v7x has only 64 MiB VMEM).

    kernel = functools.partial(_mixer_level_kernel, H=H, G=G, roll_np=roll_np)
    out = pl.pallas_call(
        kernel,
        out_shape=jax.ShapeDtypeStruct((n_nodes, bs_g, W, L), dtype),
        grid=(n_nodes, bs_g),
        in_specs=[
            pl.BlockSpec((1, 1, 2, W, L), lambda nn, bb: (nn, bb, 0, 0, 0)),
            pl.BlockSpec(memory_space=pltpu.MemorySpace.SMEM),  # w1 flat
            pl.BlockSpec(memory_space=pltpu.MemorySpace.SMEM),  # b1 flat
            pl.BlockSpec(memory_space=pltpu.MemorySpace.SMEM),  # w2 flat
            pl.BlockSpec(memory_space=pltpu.MemorySpace.SMEM),  # b2 flat
        ],
        out_specs=pl.BlockSpec((1, 1, W, L), lambda nn, bb: (nn, bb, 0, 0)),
        compiler_params=pltpu.CompilerParams(
            dimension_semantics=("parallel", "parallel"),
            vmem_limit_bytes=vmem_limit),
    )(x, w1.reshape(-1), b1.reshape(-1), w2.reshape(-1), b2.reshape(-1))

    out = out.reshape(n_nodes, bs_g, W, G, H)
    out = out.transpose(0, 1, 3, 2, 4).reshape(n_nodes, bs, W, H)
    return out


# -----------------------------------------------------------------------------
# Tree structure (grouped by depth), per-level stacked params, forward pass.
# -----------------------------------------------------------------------------
def build_levels(in_channels):
    """Mixer nodes grouped by depth, deepest level first.

    Node: {"id": int, "a": src, "b": src}, src = ("leaf", channel) or
    ("mix", node_id).  Mirrors the PyTorch split: A = first tot//2 channels.
    """
    by_depth = {}
    counter = [0]

    def rec(lo, hi, depth):
        if hi - lo == 1:
            return ("leaf", lo)
        mid = lo + (hi - lo) // 2
        a = rec(lo, mid, depth + 1)
        b = rec(mid, hi, depth + 1)
        nid = counter[0]
        counter[0] += 1
        by_depth.setdefault(depth, []).append({"id": nid, "a": a, "b": b})
        return ("mix", nid)

    rec(0, in_channels, 0)
    return [by_depth[d] for d in sorted(by_depth, reverse=True)]


def init_conv_params(key, levels):
    """Deterministic per-level stacked mixer parameters."""
    params = []
    for lvl in levels:
        n = len(lvl)
        key, k1, k2, k3, k4 = jax.random.split(key, 5)
        params.append({
            "w1": 0.1 * jax.random.normal(k1, (n, 2, 2, 3, 3), jnp.float32),
            "b1": 0.1 * jax.random.normal(k2, (n, 2), jnp.float32),
            "w2": 0.1 * jax.random.normal(k3, (n, 1, 2, 3, 3), jnp.float32),
            "b2": 0.1 * jax.random.normal(k4, (n, 1), jnp.float32),
        })
    return params


def conv_forward(levels, params, data, styles=None, texts=None):
    """data: (bs, C, W, H) -> (bs, 1, W, H).  styles/texts unused (as in ref)."""
    bs, tot, W, H = data.shape
    if tot == 1:
        return data
    produced = {}

    def plane(src):
        kind, idx = src
        return data[:, idx] if kind == "leaf" else produced[idx]

    for lvl, p in zip(levels, params):
        xA = jnp.stack([plane(nd["a"]) for nd in lvl], axis=0)   # (n, bs, W, H)
        xB = jnp.stack([plane(nd["b"]) for nd in lvl], axis=0)
        out = mixer_level_pallas(xA, xB, p["w1"], p["b1"], p["w2"], p["b2"])
        for i, nd in enumerate(lvl):
            produced[nd["id"]] = out[i]
    return produced[levels[-1][0]["id"]][:, None]                # (bs, 1, W, H)


# -----------------------------------------------------------------------------
# Pure-JAX reference (for correctness check)
# -----------------------------------------------------------------------------
def _ref_mixer(xA, xB, w1, b1, w2, b2):
    x = jnp.stack([xA, xB], axis=1)                              # (bs, 2, W, H)
    xp = jnp.pad(x, ((0, 0), (0, 0), (1, 1), (1, 1)), mode="reflect")
    y = jax.lax.conv_general_dilated(
        xp, w1, (1, 1), "VALID", dimension_numbers=("NCHW", "OIHW", "NCHW"))
    y = y + b1[None, :, None, None]
    m = jnp.mean(y, axis=(2, 3), keepdims=True)
    v = jnp.mean((y - m) ** 2, axis=(2, 3), keepdims=True)
    y = (y - m) / jnp.sqrt(v + 1e-5)
    y = jnp.maximum(y, 0.0)
    yp = jnp.pad(y, ((0, 0), (0, 0), (1, 1), (1, 1)), mode="reflect")
    out = jax.lax.conv_general_dilated(
        yp, w2, (1, 1), "VALID", dimension_numbers=("NCHW", "OIHW", "NCHW"))
    return out + b2[None, :, None, None]


def ref_forward(levels, params, data):
    bs, tot, W, H = data.shape
    if tot == 1:
        return data
    produced = {}

    def plane(src):
        kind, idx = src
        return data[:, idx] if kind == "leaf" else produced[idx]

    for lvl, p in zip(levels, params):
        for i, nd in enumerate(lvl):
            o = _ref_mixer(plane(nd["a"]), plane(nd["b"]),
                           p["w1"][i], p["b1"][i], p["w2"][i], p["b2"][i])
            produced[nd["id"]] = o[:, 0]
    return produced[levels[-1][0]["id"]][:, None]


# -----------------------------------------------------------------------------
if __name__ == "__main__":
    key = jax.random.PRNGKey(0)
    k_data, k_params = jax.random.split(key)

    bs, C, W, H = 2, 4, 16, 16
    data = jax.random.normal(k_data, (bs, C, W, H), jnp.float32)
    levels = build_levels(C)
    params = init_conv_params(k_params, levels)

    # Probe pltpu.roll direction eagerly (outside any trace); result is cached.
    _roll_matches_numpy()

    # Jit the whole recursive forward: all log2(C) pallas_calls plus the
    # fold/unfold layout plumbing run as one XLA program (single dispatch).
    fwd = jax.jit(lambda d, prm: conv_forward(levels, prm, d))

    out = jax.block_until_ready(fwd(data, params))
    assert out.shape == (bs, 1, W, H), out.shape

    ref = jax.block_until_ready(ref_forward(levels, params, data))
    if not jnp.allclose(out, ref, rtol=2e-3, atol=2e-3):
        raise AssertionError(
            f"mismatch: max abs err {float(jnp.max(jnp.abs(out - ref)))}")

    print("KERNEL_OK")
</pallas_src>

<mosaic_0001>
module attributes {stable_mosaic.version = 11 : i64} {
  func.func @k(%arg0: memref<8x128xf32, #tpu.memory_space<vmem>>, %arg1: memref<8x128xf32, #tpu.memory_space<vmem>>) attributes {dimension_semantics = [], scalar_prefetch = 0 : i64, scratch_operands = 0 : i64, tpu.core_type = #tpu.core_type<tc>} {
    %c0 = arith.constant 0 : index
    %c0_0 = arith.constant 0 : index
    %0 = vector.load %arg0[%c0, %c0_0] : memref<8x128xf32, #tpu.memory_space<vmem>>, vector<8x128xf32>
    %c1_i32 = arith.constant 1 : i32
    %1 = tpu.dynamic_rotate %0 by %c1_i32 dim 1 : vector<8x128xf32>, i32 -> vector<8x128xf32>
    %c0_1 = arith.constant 0 : index
    %c0_2 = arith.constant 0 : index
    %2 = vector.load %arg1[%c0_1, %c0_2] : memref<8x128xf32, #tpu.memory_space<vmem>>, vector<8x128xf32>
    tpu.vector_store %arg1[%c0_1, %c0_2], %1 {strides = array<i32>} : memref<8x128xf32, #tpu.memory_space<vmem>>, vector<8x128xf32>,
    return
  }
}

</mosaic_0001>

<llo_original>
// kernel: tpu_custom_call.1
$region0: #{tpu_custom_call.1}
  #allocation0 [shape = 'u32[]', space=smem, size = 0x4, offset = 0x4, fixed_abs, tag = 'smem constant byte address 0x4 - core index']
  #allocation1 [shape = 'u32[144,128]{1,0:T(1,128)}', space=vmem, size = 0x12000, scoped, tag = 'internal scratch']
  %s0 = inlined_call_operand.hbm [shape: f32[8,128], index: 0, kind: input, shape index: {}]
  %s1 = inlined_call_operand.hbm [shape: f32[8,128], index: 1, kind: output, shape index: {}]
  %s2 = sld [smem:[#allocation0]]
  $region18: #{tpu_custom_call.1} parent=0
    _
  %s4 = ssub.s32 1, %s2
  %s5 = scalar_select 0, %s4, %s2
  $region1: #{tpu_custom_call.1} parent=0
    #allocation2 [shape = 'u8[4096]{0}', space=vmem, size = 0x1000, scoped, tag = 'input window, operand 0, single buffered']
    #allocation3 [shape = 's32[1]{0}', space=sflag, size = 0x4, scoped, tag = 'scoped memory for tpu_custom_call.1']
    #allocation4 [shape = 's32[1]{0}', space=sflag, size = 0x4, scoped, tag = 'scoped memory for tpu_custom_call.1']
    #allocation5 [shape = 'u8[4096]{0}', space=vmem, size = 0x1000, scoped, tag = 'output window, operand 0, single buffered']
    %6 = vsyncpa [#allocation3], 0
    %7 = vsyncpa [#allocation4], 0
    // Predicated region
    $region2: #{tpu_custom_call.1} parent=1 // pred_check
      _
    $region3: #{tpu_custom_call.1} parent=1 // pred_check_branch
      %9 = sbr.rel (0) target = $region5
    $region4: #{tpu_custom_call.1} parent=1 // pred_region
      %s11 = ssub.s32 128, 128
      %12 = vsyncadd [#allocation3], %s11
      %s14 = sshll.u32 [#allocation2], 4
      %s15 = int_to_ptr.vmem [resolvable:$true] %s14
      %17 = dma.hbm_to_vmem [thread:$0]  %s0, 128, %s15, [#allocation3]
    $region5: #{tpu_custom_call.1} parent=1 // pred_fallthru
      _
    // Predicated region
    $region6: #{tpu_custom_call.1} parent=1 // pred_check
      _
    $region7: #{tpu_custom_call.1} parent=1 // pred_check_branch
      %19 = sbr.rel (0) target = $region9
    $region8: #{tpu_custom_call.1} parent=1 // pred_region
      %20 = dma.done [#allocation3], 128
    $region9: #{tpu_custom_call.1} parent=1 // pred_fallthru
      _
    %v21 = vld [vmem:[#allocation2] sm:$0xff]
    %22 = vrot.lane.b32.xlu0 %v21, 1
    %v23 = vpop.permute.xlu0 %22
    %24 = vst [vmem:[#allocation5] sm:$0xff] %v23
    // Predicated region
    $region10: #{tpu_custom_call.1} parent=1 // pred_check
      _
    $region11: #{tpu_custom_call.1} parent=1 // pred_check_branch
      %26 = sbr.rel (0) target = $region13
    $region12: #{tpu_custom_call.1} parent=1 // pred_region
      %s28 = ssub.s32 128, 128
      %29 = vsyncadd [#allocation4], %s28
      %s31 = sshll.u32 [#allocation5], 4
      %s32 = int_to_ptr.vmem [resolvable:$true] %s31
      %34 = dma.vmem_to_hbm [thread:$0]  %s32, 128, %s1, [#allocation4]
    $region13: #{tpu_custom_call.1} parent=1 // pred_fallthru
      _
    // Predicated region
    $region14: #{tpu_custom_call.1} parent=1 // pred_check
      _
    $region15: #{tpu_custom_call.1} parent=1 // pred_check_branch
      %36 = sbr.rel (0) target = $region17
    $region16: #{tpu_custom_call.1} parent=1 // pred_region
      %37 = dma.done [#allocation4], 128
    $region17: #{tpu_custom_call.1} parent=1 // pred_fallthru
      _
    %38 = vsyncpa [#allocation3], 1
    %39 = vsyncpa [#allocation4], 1

</llo_original>
